<compile_context>
chip_gen: v5e
topology: v5e:2x2
jax: 0.10.0
libtpu: 0.0.40
codegen_flags: <defaults>
</compile_context>

<pallas_src>
import jax
import jax.numpy as jnp
from jax import lax
from jax.experimental import pallas as pl
from jax.experimental.pallas import tpu as pltpu

LANE = 128


def _round_up(n, m):
    return ((n + m - 1) // m) * m


def _pad_to(a, shape):
    return jnp.pad(a, [(0, t - s) for s, t in zip(a.shape, shape)])


def _softplus(x):
    # Numerically stable softplus; matches torch.nn.functional.softplus to f32 eps.
    return jnp.maximum(x, 0.0) + jnp.log(1.0 + jnp.exp(-jnp.abs(x)))


# ---------------------------------------------------------------------------
# Kernel: the whole forward pass in a single VMEM-resident invocation.
# ---------------------------------------------------------------------------
def _convsparsenet_kernel(x_ref, wc_ref, bc_ref, w1_ref, b1_ref, w2_ref, b2_ref,
                          w3_ref, b3_ref, w4_ref, b4_ref, o_ref):
    # Contract the activation feature dim (1) with the weight's in-dim (1):
    # y = a @ W.T with W kept in native PyTorch (out, in) layout (no transposes).
    dn = (((1,), (1,)), ((), ()))

    def linear(a, w_ref, b_ref):
        return lax.dot_general(a, w_ref[...], dn,
                               preferred_element_type=jnp.float32) + b_ref[...]

    a = _softplus(linear(x_ref[...], wc_ref, bc_ref))   # conv-as-dense-linear + softplus
    a = _softplus(linear(a, w1_ref, b1_ref))
    a = _softplus(linear(a, w2_ref, b2_ref))
    a = _softplus(linear(a, w3_ref, b3_ref))
    o_ref[...] = linear(a, w4_ref, b4_ref).astype(o_ref.dtype)


# ---------------------------------------------------------------------------
# Host-side (one-time) weight packing.
# ---------------------------------------------------------------------------
def conv_to_dense(conv_w, conv_b, height, width):
    """Exact im2col expansion of Conv2d(1, C, K, stride=K) into a dense linear.

    Returns W_dense (C*S, height*width), b_dense (C*S,) such that
    x_flat @ W_dense.T + b_dense == flatten(conv2d(x) + bias) in PyTorch's
    (C, H//K, W//K) row-major flattening order.
    """
    C, _, K, _ = conv_w.shape
    h_out, w_out = height // K, width // K
    S = h_out * w_out
    rows = jnp.arange(height)[:, None]
    cols = jnp.arange(width)[None, :]
    s_idx = (rows // K) * w_out + (cols // K)            # patch index per input pixel
    k_idx = (rows % K) * K + (cols % K)                  # within-patch index per pixel
    wf = conv_w.reshape(C, K * K)
    gathered = wf[:, k_idx.reshape(-1)]                  # (C, H*W)
    onehot = (s_idx.reshape(-1)[None, :] ==
              jnp.arange(S)[:, None]).astype(conv_w.dtype)   # (S, H*W)
    w_dense = (gathered[:, None, :] * onehot[None, :, :]).reshape(C * S, height * width)
    b_dense = jnp.repeat(conv_b, S)
    return w_dense, b_dense


def pack_params(conv_w, conv_b, w1, b1, w2, b2, w3, b3, w4, b4, height, width):
    """Fold the conv into a dense linear and zero-pad every (out, in) weight and
    bias to lane-aligned (multiple-of-128) shapes. Done once, amortized."""
    wc, bc = conv_to_dense(conv_w, conv_b, height, width)

    def pack_linear(w, b):
        out_p = _round_up(w.shape[0], LANE)
        in_p = _round_up(w.shape[1], LANE)
        return (_pad_to(w.astype(jnp.float32), (out_p, in_p)),
                _pad_to(b.astype(jnp.float32), (out_p,)).reshape(1, out_p))

    return tuple(pack_linear(w, b) for w, b in
                 ((wc, bc), (w1, b1), (w2, b2), (w3, b3), (w4, b4)))


def convsparsenet_forward(x, packed, ny):
    """Pallas forward pass. x: flat input with d*y elements. Returns (1, ny)."""
    (wc, bc), (w1, b1), (w2, b2), (w3, b3), (w4, b4) = packed
    in_p = wc.shape[1]
    out_p = w4.shape[0]
    x_pad = _pad_to(x.reshape(1, -1).astype(jnp.float32), (1, in_p))

    weights = (wc, bc, w1, b1, w2, b2, w3, b3, w4, b4)
    flops = 2 * sum(w.shape[0] * w.shape[1] for w, _ in packed)
    n_softplus = sum(w.shape[0] for w, _ in packed[:-1])
    bytes_accessed = 4 * (x_pad.size + sum(a.size for a in weights) + out_p)

    out = pl.pallas_call(
        _convsparsenet_kernel,
        out_shape=jax.ShapeDtypeStruct((1, out_p), jnp.float32),
        in_specs=[pl.BlockSpec(memory_space=pltpu.MemorySpace.VMEM)] * (1 + len(weights)),
        out_specs=pl.BlockSpec(memory_space=pltpu.MemorySpace.VMEM),
        cost_estimate=pl.CostEstimate(flops=flops,
                                      transcendentals=2 * n_softplus,
                                      bytes_accessed=bytes_accessed),
    )(x_pad, *weights)
    return out[:, :ny]


if __name__ == "__main__":
    # Shapes consistent with the module: Conv2d(1,10,4,4) feeding Linear(10*5,128)
    # implies 5 conv output positions -> a 20 x 4 input image.
    d, y_width = 20, 4
    hidden, C, K = 128, 10, 4
    ny = 128
    feat = C * (d // K) * (y_width // K)
    assert feat == 50  # matches Linear(int(10 * 5), hidden_units)

    key = jax.random.PRNGKey(0)
    ks = jax.random.split(key, 11)

    def linear_init(kw, kb, out_f, in_f):
        bound = 1.0 / (in_f ** 0.5)
        w = jax.random.uniform(kw, (out_f, in_f), jnp.float32, -bound, bound)
        b = jax.random.uniform(kb, (out_f,), jnp.float32, -bound, bound)
        return w, b

    x = jax.random.normal(ks[0], (d * y_width,), jnp.float32)
    cb = 1.0 / ((1 * K * K) ** 0.5)
    conv_w = jax.random.uniform(ks[1], (C, 1, K, K), jnp.float32, -cb, cb)
    conv_b = jax.random.uniform(ks[2], (C,), jnp.float32, -cb, cb)
    w1, b1 = linear_init(ks[3], ks[4], hidden, feat)
    w2, b2 = linear_init(ks[5], ks[6], hidden, hidden)
    w3, b3 = linear_init(ks[7], ks[8], hidden, hidden)
    w4, b4 = linear_init(ks[9], ks[10], ny, hidden)

    packed = pack_params(conv_w, conv_b, w1, b1, w2, b2, w3, b3, w4, b4, d, y_width)
    out = jax.block_until_ready(convsparsenet_forward(x, packed, ny))

    # Pure-JAX reference mirroring the PyTorch forward exactly.
    sp = lambda v: jnp.logaddexp(v, 0.0)
    xi = x.reshape(1, 1, d, y_width)
    conv = lax.conv_general_dilated(xi, conv_w, (K, K), "VALID",
                                    dimension_numbers=("NCHW", "OIHW", "NCHW"))
    conv = conv + conv_b.reshape(1, C, 1, 1)
    a = sp(conv).reshape(1, -1)
    a = sp(a @ w1.T + b1)
    a = sp(a @ w2.T + b2)
    a = sp(a @ w3.T + b3)
    ref = a @ w4.T + b4

    assert out.shape == (1, ny)
    assert jnp.allclose(out, ref, atol=1e-4, rtol=1e-4)
    print("KERNEL_OK")
</pallas_src>

<mosaic_0001>
module attributes {stable_mosaic.version = 11 : i64} {
  func.func @_convsparsenet_kernel(%arg0: memref<1x128xf32, #tpu.memory_space<vmem>>, %arg1: memref<128x128xf32, #tpu.memory_space<vmem>>, %arg2: memref<1x128xf32, #tpu.memory_space<vmem>>, %arg3: memref<128x128xf32, #tpu.memory_space<vmem>>, %arg4: memref<1x128xf32, #tpu.memory_space<vmem>>, %arg5: memref<128x128xf32, #tpu.memory_space<vmem>>, %arg6: memref<1x128xf32, #tpu.memory_space<vmem>>, %arg7: memref<128x128xf32, #tpu.memory_space<vmem>>, %arg8: memref<1x128xf32, #tpu.memory_space<vmem>>, %arg9: memref<128x128xf32, #tpu.memory_space<vmem>>, %arg10: memref<1x128xf32, #tpu.memory_space<vmem>>, %arg11: memref<1x128xf32, #tpu.memory_space<vmem>>) attributes {dimension_semantics = [], scalar_prefetch = 0 : i64, scratch_operands = 0 : i64, tpu.core_type = #tpu.core_type<tc>} {
    %c0 = arith.constant 0 : index
    %c0_0 = arith.constant 0 : index
    %0 = vector.load %arg0[%c0, %c0_0] : memref<1x128xf32, #tpu.memory_space<vmem>>, vector<1x128xf32>
    %c0_1 = arith.constant 0 : index
    %c0_2 = arith.constant 0 : index
    %1 = vector.load %arg1[%c0_1, %c0_2] : memref<128x128xf32, #tpu.memory_space<vmem>>, vector<128x128xf32>
    %cst = arith.constant dense<0.000000e+00> : vector<1x128xf32>
    %2 = tpu.matmul %0, %1, %cst {dimension_numbers = #tpu.dot_dimension_numbers<[1], [1], [0], [0], [0, 0, 1, 0], [], []>} : vector<1x128xf32>, vector<128x128xf32>, vector<1x128xf32> -> vector<1x128xf32>
    %c0_3 = arith.constant 0 : index
    %c0_4 = arith.constant 0 : index
    %3 = vector.load %arg2[%c0_3, %c0_4] : memref<1x128xf32, #tpu.memory_space<vmem>>, vector<1x128xf32>
    %4 = arith.addf %2, %3 : vector<1x128xf32>
    %cst_5 = arith.constant 0.000000e+00 : f32
    %5 = vector.broadcast %cst_5 : f32 to vector<1x128xf32>
    %6 = arith.maximumf %4, %5 : vector<1x128xf32>
    %7 = math.absf %4 : vector<1x128xf32>
    %cst_6 = arith.constant 0.000000e+00 : f32
    %8 = vector.broadcast %cst_6 : f32 to vector<1x128xf32>
    %9 = arith.subf %8, %7 : vector<1x128xf32>
    %10 = math.exp %9 : vector<1x128xf32>
    %cst_7 = arith.constant 1.000000e+00 : f32
    %11 = vector.broadcast %cst_7 : f32 to vector<1x128xf32>
    %12 = arith.addf %11, %10 : vector<1x128xf32>
    %13 = math.log %12 : vector<1x128xf32>
    %14 = arith.addf %6, %13 : vector<1x128xf32>
    %c0_8 = arith.constant 0 : index
    %c0_9 = arith.constant 0 : index
    %15 = vector.load %arg3[%c0_8, %c0_9] : memref<128x128xf32, #tpu.memory_space<vmem>>, vector<128x128xf32>
    %cst_10 = arith.constant dense<0.000000e+00> : vector<1x128xf32>
    %16 = tpu.matmul %14, %15, %cst_10 {dimension_numbers = #tpu.dot_dimension_numbers<[1], [1], [0], [0], [0, 0, 1, 0], [], []>} : vector<1x128xf32>, vector<128x128xf32>, vector<1x128xf32> -> vector<1x128xf32>
    %c0_11 = arith.constant 0 : index
    %c0_12 = arith.constant 0 : index
    %17 = vector.load %arg4[%c0_11, %c0_12] : memref<1x128xf32, #tpu.memory_space<vmem>>, vector<1x128xf32>
    %18 = arith.addf %16, %17 : vector<1x128xf32>
    %cst_13 = arith.constant 0.000000e+00 : f32
    %19 = vector.broadcast %cst_13 : f32 to vector<1x128xf32>
    %20 = arith.maximumf %18, %19 : vector<1x128xf32>
    %21 = math.absf %18 : vector<1x128xf32>
    %cst_14 = arith.constant 0.000000e+00 : f32
    %22 = vector.broadcast %cst_14 : f32 to vector<1x128xf32>
    %23 = arith.subf %22, %21 : vector<1x128xf32>
    %24 = math.exp %23 : vector<1x128xf32>
    %cst_15 = arith.constant 1.000000e+00 : f32
    %25 = vector.broadcast %cst_15 : f32 to vector<1x128xf32>
    %26 = arith.addf %25, %24 : vector<1x128xf32>
    %27 = math.log %26 : vector<1x128xf32>
    %28 = arith.addf %20, %27 : vector<1x128xf32>
    %c0_16 = arith.constant 0 : index
    %c0_17 = arith.constant 0 : index
    %29 = vector.load %arg5[%c0_16, %c0_17] : memref<128x128xf32, #tpu.memory_space<vmem>>, vector<128x128xf32>
    %cst_18 = arith.constant dense<0.000000e+00> : vector<1x128xf32>
    %30 = tpu.matmul %28, %29, %cst_18 {dimension_numbers = #tpu.dot_dimension_numbers<[1], [1], [0], [0], [0, 0, 1, 0], [], []>} : vector<1x128xf32>, vector<128x128xf32>, vector<1x128xf32> -> vector<1x128xf32>
    %c0_19 = arith.constant 0 : index
    %c0_20 = arith.constant 0 : index
    %31 = vector.load %arg6[%c0_19, %c0_20] : memref<1x128xf32, #tpu.memory_space<vmem>>, vector<1x128xf32>
    %32 = arith.addf %30, %31 : vector<1x128xf32>
    %cst_21 = arith.constant 0.000000e+00 : f32
    %33 = vector.broadcast %cst_21 : f32 to vector<1x128xf32>
    %34 = arith.maximumf %32, %33 : vector<1x128xf32>
    %35 = math.absf %32 : vector<1x128xf32>
    %cst_22 = arith.constant 0.000000e+00 : f32
    %36 = vector.broadcast %cst_22 : f32 to vector<1x128xf32>
    %37 = arith.subf %36, %35 : vector<1x128xf32>
    %38 = math.exp %37 : vector<1x128xf32>
    %cst_23 = arith.constant 1.000000e+00 : f32
    %39 = vector.broadcast %cst_23 : f32 to vector<1x128xf32>
    %40 = arith.addf %39, %38 : vector<1x128xf32>
    %41 = math.log %40 : vector<1x128xf32>
    %42 = arith.addf %34, %41 : vector<1x128xf32>
    %c0_24 = arith.constant 0 : index
    %c0_25 = arith.constant 0 : index
    %43 = vector.load %arg7[%c0_24, %c0_25] : memref<128x128xf32, #tpu.memory_space<vmem>>, vector<128x128xf32>
    %cst_26 = arith.constant dense<0.000000e+00> : vector<1x128xf32>
    %44 = tpu.matmul %42, %43, %cst_26 {dimension_numbers = #tpu.dot_dimension_numbers<[1], [1], [0], [0], [0, 0, 1, 0], [], []>} : vector<1x128xf32>, vector<128x128xf32>, vector<1x128xf32> -> vector<1x128xf32>
    %c0_27 = arith.constant 0 : index
    %c0_28 = arith.constant 0 : index
    %45 = vector.load %arg8[%c0_27, %c0_28] : memref<1x128xf32, #tpu.memory_space<vmem>>, vector<1x128xf32>
    %46 = arith.addf %44, %45 : vector<1x128xf32>
    %cst_29 = arith.constant 0.000000e+00 : f32
    %47 = vector.broadcast %cst_29 : f32 to vector<1x128xf32>
    %48 = arith.maximumf %46, %47 : vector<1x128xf32>
    %49 = math.absf %46 : vector<1x128xf32>
    %cst_30 = arith.constant 0.000000e+00 : f32
    %50 = vector.broadcast %cst_30 : f32 to vector<1x128xf32>
    %51 = arith.subf %50, %49 : vector<1x128xf32>
    %52 = math.exp %51 : vector<1x128xf32>
    %cst_31 = arith.constant 1.000000e+00 : f32
    %53 = vector.broadcast %cst_31 : f32 to vector<1x128xf32>
    %54 = arith.addf %53, %52 : vector<1x128xf32>
    %55 = math.log %54 : vector<1x128xf32>
    %56 = arith.addf %48, %55 : vector<1x128xf32>
    %c0_32 = arith.constant 0 : index
    %c0_33 = arith.constant 0 : index
    %57 = vector.load %arg9[%c0_32, %c0_33] : memref<128x128xf32, #tpu.memory_space<vmem>>, vector<128x128xf32>
    %cst_34 = arith.constant dense<0.000000e+00> : vector<1x128xf32>
    %58 = tpu.matmul %56, %57, %cst_34 {dimension_numbers = #tpu.dot_dimension_numbers<[1], [1], [0], [0], [0, 0, 1, 0], [], []>} : vector<1x128xf32>, vector<128x128xf32>, vector<1x128xf32> -> vector<1x128xf32>
    %c0_35 = arith.constant 0 : index
    %c0_36 = arith.constant 0 : index
    %59 = vector.load %arg10[%c0_35, %c0_36] : memref<1x128xf32, #tpu.memory_space<vmem>>, vector<1x128xf32>
    %60 = arith.addf %58, %59 : vector<1x128xf32>
    %c0_37 = arith.constant 0 : index
    %c0_38 = arith.constant 0 : index
    %61 = vector.load %arg11[%c0_37, %c0_38] : memref<1x128xf32, #tpu.memory_space<vmem>>, vector<1x128xf32>
    tpu.vector_store %arg11[%c0_37, %c0_38], %60 {strides = array<i32>} : memref<1x128xf32, #tpu.memory_space<vmem>>, vector<1x128xf32>,
    return
  }
}

</mosaic_0001>

<llo_original>
// kernel: tpu_custom_call.1
$region0: #{tpu_custom_call.1}
  #allocation0 [shape = 'u32[]', space=smem, size = 0x4, offset = 0x4, fixed_abs, tag = 'smem constant byte address 0x4 - core index']
  #allocation1 [shape = 'u32[72,128]{1,0:T(1,128)}', space=vmem, size = 0x9000, scoped, tag = 'internal scratch']
  %s0 = inlined_call_operand.hbm [shape: f32[1,128], index: 0, kind: input, shape index: {}]
  %s1 = inlined_call_operand.hbm [shape: f32[128,128], index: 1, kind: input, shape index: {}]
  %s2 = inlined_call_operand.vmem [shape: f32[1,128], index: 2, kind: input, shape index: {}]
  %s3 = inlined_call_operand.hbm [shape: f32[128,128], index: 3, kind: input, shape index: {}]
  %s4 = inlined_call_operand.vmem [shape: f32[1,128], index: 4, kind: input, shape index: {}]
  %s5 = inlined_call_operand.hbm [shape: f32[128,128], index: 5, kind: input, shape index: {}]
  %s6 = inlined_call_operand.vmem [shape: f32[1,128], index: 6, kind: input, shape index: {}]
  %s7 = inlined_call_operand.hbm [shape: f32[128,128], index: 7, kind: input, shape index: {}]
  %s8 = inlined_call_operand.vmem [shape: f32[1,128], index: 8, kind: input, shape index: {}]
  %s9 = inlined_call_operand.hbm [shape: f32[128,128], index: 9, kind: input, shape index: {}]
  %s10 = inlined_call_operand.vmem [shape: f32[1,128], index: 10, kind: input, shape index: {}]
  %s11 = inlined_call_operand.hbm [shape: f32[1,128], index: 11, kind: output, shape index: {}]
  %s12 = sld [smem:[#allocation0]]
  $region78: #{tpu_custom_call.1} parent=0
    _
  %s14 = ssub.s32 1, %s12
  %s15 = scalar_select 0, %s14, %s12
  $region1: #{tpu_custom_call.1} parent=0
    #allocation2 [shape = 'u8[512]{0}', space=vmem, size = 0x400, scoped, tag = 'input window, operand 0, single buffered']
    #allocation3 [shape = 's32[1]{0}', space=sflag, size = 0x4, scoped, tag = 'scoped memory for tpu_custom_call.1']
    #allocation4 [shape = 's32[1]{0}', space=sflag, size = 0x4, scoped, tag = 'scoped memory for tpu_custom_call.1']
    #allocation5 [shape = 'u8[65536]{0}', space=vmem, size = 0x10000, scoped, tag = 'input window, operand 1, single buffered']
    #allocation6 [shape = 's32[1]{0}', space=sflag, size = 0x4, scoped, tag = 'scoped memory for tpu_custom_call.1']
    #allocation7 [shape = 'u8[65536]{0}', space=vmem, size = 0x10000, scoped, tag = 'input window, operand 3, single buffered']
    #allocation8 [shape = 'u8[65536]{0}', space=vmem, size = 0x10000, scoped, tag = 'input window, operand 5, single buffered']
    #allocation9 [shape = 's32[1]{0}', space=sflag, size = 0x4, scoped, tag = 'scoped memory for tpu_custom_call.1']
    #allocation10 [shape = 'u8[65536]{0}', space=vmem, size = 0x10000, scoped, tag = 'input window, operand 7, single buffered']
    #allocation11 [shape = 'u8[65536]{0}', space=vmem, size = 0x10000, scoped, tag = 'input window, operand 9, single buffered']
    #allocation12 [shape = 's32[1]{0}', space=sflag, size = 0x4, scoped, tag = 'scoped memory for tpu_custom_call.1']
    #allocation13 [shape = 'u8[512]{0}', space=vmem, size = 0x400, scoped, tag = 'output window, operand 0, single buffered']
    %16 = vsyncpa [#allocation3], 0
    %17 = vsyncpa [#allocation6], 0
    %18 = vsyncpa [#allocation9], 0
    %19 = vsyncpa [#allocation12], 0
    %20 = vsyncpa [#allocation4], 0
    // Predicated region
    $region2: #{tpu_custom_call.1} parent=1 // pred_check
      _
    $region3: #{tpu_custom_call.1} parent=1 // pred_check_branch
      %22 = sbr.rel (0) target = $region5
    $region4: #{tpu_custom_call.1} parent=1 // pred_region
      %24 = vsyncadd [#allocation3], 0
      %s26 = sshll.u32 %s0, 4
      %s27 = int_to_ptr.hbm [resolvable:$true] %s26
      %s28 = sshll.u32 [#allocation2], 4
      %s29 = int_to_ptr.vmem [resolvable:$true] %s28
      %31 = dma.hbm_to_vmem [thread:$0]  %s27, 16, %s29, [#allocation3]
    $region5: #{tpu_custom_call.1} parent=1 // pred_fallthru
      _
    // Predicated region
    $region6: #{tpu_custom_call.1} parent=1 // pred_check
      _
    $region7: #{tpu_custom_call.1} parent=1 // pred_check_branch
      %33 = sbr.rel (0) target = $region9
    $region8: #{tpu_custom_call.1} parent=1 // pred_region
      %35 = vsyncadd [#allocation6], 0
      %s36 = sshll.u32 %s1, 4
      %s37 = int_to_ptr.hbm [resolvable:$true] %s36
      %s38 = sshll.u32 [#allocation5], 4
      %s39 = int_to_ptr.vmem [resolvable:$true] %s38
      %44 = dma.hbm_to_vmem [thread:$0]  %s37, 2048, %s39, [#allocation6], 128, 128, 8
    $region9: #{tpu_custom_call.1} parent=1 // pred_fallthru
      _
    // Predicated region
    $region10: #{tpu_custom_call.1} parent=1 // pred_check
      _
    $region11: #{tpu_custom_call.1} parent=1 // pred_check_branch
      %46 = sbr.rel (0) target = $region13
    $region12: #{tpu_custom_call.1} parent=1 // pred_region
      _
    $region13: #{tpu_custom_call.1} parent=1 // pred_fallthru
      _
    // Predicated region
    $region14: #{tpu_custom_call.1} parent=1 // pred_check
      _
    $region15: #{tpu_custom_call.1} parent=1 // pred_check_branch
      %48 = sbr.rel (0) target = $region17
    $region16: #{tpu_custom_call.1} parent=1 // pred_region
      %50 = vsyncadd [#allocation6], 0
      %s51 = sshll.u32 %s3, 4
      %s52 = int_to_ptr.hbm [resolvable:$true] %s51
      %s53 = sshll.u32 [#allocation7], 4
      %s54 = int_to_ptr.vmem [resolvable:$true] %s53
      %59 = dma.hbm_to_vmem [thread:$0]  %s52, 2048, %s54, [#allocation6], 128, 128, 8
    $region17: #{tpu_custom_call.1} parent=1 // pred_fallthru
      _
    // Predicated region
    $region18: #{tpu_custom_call.1} parent=1 // pred_check
      _
    $region19: #{tpu_custom_call.1} parent=1 // pred_check_branch
      %61 = sbr.rel (0) target = $region21
    $region20: #{tpu_custom_call.1} parent=1 // pred_region
      _
    $region21: #{tpu_custom_call.1} parent=1 // pred_fallthru
      _
    // Predicated region
    $region22: #{tpu_custom_call.1} parent=1 // pred_check
      _
    $region23: #{tpu_custom_call.1} parent=1 // pred_check_branch
      %63 = sbr.rel (0) target = $region25
    $region24: #{tpu_custom_call.1} parent=1 // pred_region
      %65 = vsyncadd [#allocation9], 0
      %s66 = sshll.u32 %s5, 4
      %s67 = int_to_ptr.hbm [resolvable:$true] %s66
      %s68 = sshll.u32 [#allocation8], 4
      %s69 = int_to_ptr.vmem [resolvable:$true] %s68
      %74 = dma.hbm_to_vmem [thread:$0]  %s67, 2048, %s69, [#allocation9], 128, 128, 8
    $region25: #{tpu_custom_call.1} parent=1 // pred_fallthru
      _
    // Predicated region
    $region26: #{tpu_custom_call.1} parent=1 // pred_check
      _
    $region27: #{tpu_custom_call.1} parent=1 // pred_check_branch
      %76 = sbr.rel (0) target = $region29
    $region28: #{tpu_custom_call.1} parent=1 // pred_region
      _
    $region29: #{tpu_custom_call.1} parent=1 // pred_fallthru
      _
    // Predicated region
    $region30: #{tpu_custom_call.1} parent=1 // pred_check
      _
    $region31: #{tpu_custom_call.1} parent=1 // pred_check_branch
      %78 = sbr.rel (0) target = $region33
    $region32: #{tpu_custom_call.1} parent=1 // pred_region
      %80 = vsyncadd [#allocation9], 0
      %s81 = sshll.u32 %s7, 4
      %s82 = int_to_ptr.hbm [resolvable:$true] %s81
      %s83 = sshll.u32 [#allocation10], 4
      %s84 = int_to_ptr.vmem [resolvable:$true] %s83
      %89 = dma.hbm_to_vmem [thread:$0]  %s82, 2048, %s84, [#allocation9], 128, 128, 8
    $region33: #{tpu_custom_call.1} parent=1 // pred_fallthru
      _
    // Predicated region
    $region34: #{tpu_custom_call.1} parent=1 // pred_check
      _
    $region35: #{tpu_custom_call.1} parent=1 // pred_check_branch
      %91 = sbr.rel (0) target = $region37
    $region36: #{tpu_custom_call.1} parent=1 // pred_region
      _
    $region37: #{tpu_custom_call.1} parent=1 // pred_fallthru
      _
    // Predicated region
    $region38: #{tpu_custom_call.1} parent=1 // pred_check
      _
    $region39: #{tpu_custom_call.1} parent=1 // pred_check_branch
      %93 = sbr.rel (0) target = $region41
    $region40: #{tpu_custom_call.1} parent=1 // pred_region
      %95 = vsyncadd [#allocation12], 0
      %s96 = sshll.u32 %s9, 4
      %s97 = int_to_ptr.hbm [resolvable:$true] %s96
      %s98 = sshll.u32 [#allocation11], 4
      %s99 = int_to_ptr.vmem [resolvable:$true] %s98
      %104 = dma.hbm_to_vmem [thread:$0]  %s97, 2048, %s99, [#allocation12], 128, 128, 8
    $region41: #{tpu_custom_call.1} parent=1 // pred_fallthru
      _
    // Predicated region
    $region42: #{tpu_custom_call.1} parent=1 // pred_check
      _
    $region43: #{tpu_custom_call.1} parent=1 // pred_check_branch
      %106 = sbr.rel (0) target = $region45
    $region44: #{tpu_custom_call.1} parent=1 // pred_region
      _
    $region45: #{tpu_custom_call.1} parent=1 // pred_fallthru
      _
    // Predicated region
    $region46: #{tpu_custom_call.1} parent=1 // pred_check
      _
    $region47: #{tpu_custom_call.1} parent=1 // pred_check_branch
      %108 = sbr.rel (0) target = $region49
    $region48: #{tpu_custom_call.1} parent=1 // pred_region
      %110 = dma.done [#allocation3], 16
    $region49: #{tpu_custom_call.1} parent=1 // pred_fallthru
      _
    // Predicated region
    $region50: #{tpu_custom_call.1} parent=1 // pred_check
      _
    $region51: #{tpu_custom_call.1} parent=1 // pred_check_branch
      %112 = sbr.rel (0) target = $region53
    $region52: #{tpu_custom_call.1} parent=1 // pred_region
      %114 = dma.done [#allocation6], 2048
    $region53: #{tpu_custom_call.1} parent=1 // pred_fallthru
      _
    // Predicated region
    $region54: #{tpu_custom_call.1} parent=1 // pred_check
      _
    $region55: #{tpu_custom_call.1} parent=1 // pred_check_branch
      %116 = sbr.rel (0) target = $region57
    $region56: #{tpu_custom_call.1} parent=1 // pred_region
      %118 = dma.done [#allocation6], 2048
    $region57: #{tpu_custom_call.1} parent=1 // pred_fallthru
      _
    // Predicated region
    $region58: #{tpu_custom_call.1} parent=1 // pred_check
      _
    $region59: #{tpu_custom_call.1} parent=1 // pred_check_branch
      %120 = sbr.rel (0) target = $region61
    $region60: #{tpu_custom_call.1} parent=1 // pred_region
      %122 = dma.done [#allocation9], 2048
    $region61: #{tpu_custom_call.1} parent=1 // pred_fallthru
      _
    // Predicated region
    $region62: #{tpu_custom_call.1} parent=1 // pred_check
      _
    $region63: #{tpu_custom_call.1} parent=1 // pred_check_branch
      %124 = sbr.rel (0) target = $region65
    $region64: #{tpu_custom_call.1} parent=1 // pred_region
      %126 = dma.done [#allocation9], 2048
    $region65: #{tpu_custom_call.1} parent=1 // pred_fallthru
      _
    // Predicated region
    $region66: #{tpu_custom_call.1} parent=1 // pred_check
      _
    $region67: #{tpu_custom_call.1} parent=1 // pred_check_branch
      %128 = sbr.rel (0) target = $region69
    $region68: #{tpu_custom_call.1} parent=1 // pred_region
      %130 = dma.done [#allocation12], 2048
    $region69: #{tpu_custom_call.1} parent=1 // pred_fallthru
      _
    %v131 = vld [vmem:[#allocation2] sm:$0x1]
    %v132 = vld [vmem:[#allocation5] sm:$0xff]
    %v133 = vld [vmem:[#allocation5 + $0x8] sm:$0xff]
    %v134 = vld [vmem:[#allocation5 + $0x10] sm:$0xff]
    %v135 = vld [vmem:[#allocation5 + $0x18] sm:$0xff]
    %v136 = vld [vmem:[#allocation5 + $0x20] sm:$0xff]
    %v137 = vld [vmem:[#allocation5 + $0x28] sm:$0xff]
    %v138 = vld [vmem:[#allocation5 + $0x30] sm:$0xff]
    %v139 = vld [vmem:[#allocation5 + $0x38] sm:$0xff]
    %v140 = vld [vmem:[#allocation5 + $0x40] sm:$0xff]
    %v141 = vld [vmem:[#allocation5 + $0x48] sm:$0xff]
    %v142 = vld [vmem:[#allocation5 + $0x50] sm:$0xff]
    %v143 = vld [vmem:[#allocation5 + $0x58] sm:$0xff]
    %v144 = vld [vmem:[#allocation5 + $0x60] sm:$0xff]
    %v145 = vld [vmem:[#allocation5 + $0x68] sm:$0xff]
    %v146 = vld [vmem:[#allocation5 + $0x70] sm:$0xff]
    %v147 = vld [vmem:[#allocation5 + $0x78] sm:$0xff]
    %v148 = vld [vmem:[%s2] sm:$0x1]
    %149 = vmatpush.xpose.msra.mxu0 %v147
    %150 = vmatpush.xpose.msra.mxu0 %v146
    %151 = vmatpush.xpose.msra.mxu0 %v145
    %152 = vmatpush.xpose.msra.mxu0 %v144
    %153 = vmatpush.xpose.msra.mxu0 %v143
    %154 = vmatpush.xpose.msra.mxu0 %v142
    %155 = vmatpush.xpose.msra.mxu0 %v141
    %156 = vmatpush.xpose.msra.mxu0 %v140
    %157 = vmatpush.xpose.msra.mxu0 %v139
    %158 = vmatpush.xpose.msra.mxu0 %v138
    %159 = vmatpush.xpose.msra.mxu0 %v137
    %160 = vmatpush.xpose.msra.mxu0 %v136
    %161 = vmatpush.xpose.msra.mxu0 %v135
    %162 = vmatpush.xpose.msra.mxu0 %v134
    %163 = vmatpush.xpose.msra.mxu0 %v133
    %164 = vmatpush.xpose.msra.mxu0 %v132
    %165 = vmatmul.f32.gmra.mxu0 %v131
    %v166 = vpop.f32.mrf.mxu0
    %v167 = vadd.f32 %v148, %v166
    %168 = vdwg.mxu0
    %v169 = vmax.f32 %v167, 0.0
    %v170 = vand.u32 2147483647, %v167
    %v171 = vsub.f32 0.0, %v170
    %v172 = vmul.f32 %v171, 1.442695
    %v173 = vpow.pop %v172
    %v174 = vadd.f32 %v173, 1.0
    %v175 = vlog2.pop %v174
    %v176 = vmul.f32 %v175, 0.6931472
    %v177 = vadd.f32 %v169, %v176
    %v178 = vld [vmem:[#allocation7] sm:$0xff]
    %v179 = vld [vmem:[#allocation7 + $0x8] sm:$0xff]
    %v180 = vld [vmem:[#allocation7 + $0x10] sm:$0xff]
    %v181 = vld [vmem:[#allocation7 + $0x18] sm:$0xff]
    %v182 = vld [vmem:[#allocation7 + $0x20] sm:$0xff]
    %v183 = vld [vmem:[#allocation7 + $0x28] sm:$0xff]
    %v184 = vld [vmem:[#allocation7 + $0x30] sm:$0xff]
    %v185 = vld [vmem:[#allocation7 + $0x38] sm:$0xff]
    %v186 = vld [vmem:[#allocation7 + $0x40] sm:$0xff]
    %v187 = vld [vmem:[#allocation7 + $0x48] sm:$0xff]
    %v188 = vld [vmem:[#allocation7 + $0x50] sm:$0xff]
    %v189 = vld [vmem:[#allocation7 + $0x58] sm:$0xff]
    %v190 = vld [vmem:[#allocation7 + $0x60] sm:$0xff]
    %v191 = vld [vmem:[#allocation7 + $0x68] sm:$0xff]
    %v192 = vld [vmem:[#allocation7 + $0x70] sm:$0xff]
    %v193 = vld [vmem:[#allocation7 + $0x78] sm:$0xff]
    %v194 = vld [vmem:[%s4] sm:$0x1]
    %195 = vmatpush.xpose.msra.mxu0 %v193
    %196 = vmatpush.xpose.msra.mxu0 %v192
    %197 = vmatpush.xpose.msra.mxu0 %v191
    %198 = vmatpush.xpose.msra.mxu0 %v190
    %199 = vmatpush.xpose.msra.mxu0 %v189
    %200 = vmatpush.xpose.msra.mxu0 %v188
    %201 = vmatpush.xpose.msra.mxu0 %v187
    %202 = vmatpush.xpose.msra.mxu0 %v186
    %203 = vmatpush.xpose.msra.mxu0 %v185
    %204 = vmatpush.xpose.msra.mxu0 %v184
    %205 = vmatpush.xpose.msra.mxu0 %v183
    %206 = vmatpush.xpose.msra.mxu0 %v182
    %207 = vmatpush.xpose.msra.mxu0 %v181
    %208 = vmatpush.xpose.msra.mxu0 %v180
    %209 = vmatpush.xpose.msra.mxu0 %v179
    %210 = vmatpush.xpose.msra.mxu0 %v178
    %211 = vmatmul.f32.gmra.mxu0 %v177
    %v212 = vpop.f32.mrf.mxu0
    %v213 = vadd.f32 %v194, %v212
    %214 = vdwg.mxu0
    %v215 = vmax.f32 %v213, 0.0
    %v216 = vand.u32 2147483647, %v213
    %v217 = vsub.f32 0.0, %v216
    %v218 = vmul.f32 %v217, 1.442695
    %v219 = vpow.pop %v218
    %v220 = vadd.f32 %v219, 1.0
    %v221 = vlog2.pop %v220
    %v222 = vmul.f32 %v221, 0.6931472
    %v223 = vadd.f32 %v215, %v222
    %v224 = vld [vmem:[#allocation8] sm:$0xff]
    %v225 = vld [vmem:[#allocation8 + $0x8] sm:$0xff]
    %v226 = vld [vmem:[#allocation8 + $0x10] sm:$0xff]
    %v227 = vld [vmem:[#allocation8 + $0x18] sm:$0xff]
    %v228 = vld [vmem:[#allocation8 + $0x20] sm:$0xff]
    %v229 = vld [vmem:[#allocation8 + $0x28] sm:$0xff]
    %v230 = vld [vmem:[#allocation8 + $0x30] sm:$0xff]
    %v231 = vld [vmem:[#allocation8 + $0x38] sm:$0xff]
    %v232 = vld [vmem:[#allocation8 + $0x40] sm:$0xff]
    %v233 = vld [vmem:[#allocation8 + $0x48] sm:$0xff]
    %v234 = vld [vmem:[#allocation8 + $0x50] sm:$0xff]
    %v235 = vld [vmem:[#allocation8 + $0x58] sm:$0xff]
    %v236 = vld [vmem:[#allocation8 + $0x60] sm:$0xff]
    %v237 = vld [vmem:[#allocation8 + $0x68] sm:$0xff]
    %v238 = vld [vmem:[#allocation8 + $0x70] sm:$0xff]
    %v239 = vld [vmem:[#allocation8 + $0x78] sm:$0xff]
    %v240 = vld [vmem:[%s6] sm:$0x1]
    %241 = vmatpush.xpose.msra.mxu0 %v239
    %242 = vmatpush.xpose.msra.mxu0 %v238
    %243 = vmatpush.xpose.msra.mxu0 %v237
    %244 = vmatpush.xpose.msra.mxu0 %v236
    %245 = vmatpush.xpose.msra.mxu0 %v235
    %246 = vmatpush.xpose.msra.mxu0 %v234
    %247 = vmatpush.xpose.msra.mxu0 %v233
    %248 = vmatpush.xpose.msra.mxu0 %v232
    %249 = vmatpush.xpose.msra.mxu0 %v231
    %250 = vmatpush.xpose.msra.mxu0 %v230
    %251 = vmatpush.xpose.msra.mxu0 %v229
    %252 = vmatpush.xpose.msra.mxu0 %v228
    %253 = vmatpush.xpose.msra.mxu0 %v227
    %254 = vmatpush.xpose.msra.mxu0 %v226
    %255 = vmatpush.xpose.msra.mxu0 %v225
    %256 = vmatpush.xpose.msra.mxu0 %v224
    %257 = vmatmul.f32.gmra.mxu0 %v223
    %v258 = vpop.f32.mrf.mxu0
    %v259 = vadd.f32 %v240, %v258
    %260 = vdwg.mxu0
    %v261 = vmax.f32 %v259, 0.0
    %v262 = vand.u32 2147483647, %v259
    %v263 = vsub.f32 0.0, %v262
    %v264 = vmul.f32 %v263, 1.442695
    %v265 = vpow.pop %v264
    %v266 = vadd.f32 %v265, 1.0
    %v267 = vlog2.pop %v266
    %v268 = vmul.f32 %v267, 0.6931472
    %v269 = vadd.f32 %v261, %v268
    %v270 = vld [vmem:[#allocation10] sm:$0xff]
    %v271 = vld [vmem:[#allocation10 + $0x8] sm:$0xff]
    %v272 = vld [vmem:[#allocation10 + $0x10] sm:$0xff]
    %v273 = vld [vmem:[#allocation10 + $0x18] sm:$0xff]
    %v274 = vld [vmem:[#allocation10 + $0x20] sm:$0xff]
    %v275 = vld [vmem:[#allocation10 + $0x28] sm:$0xff]
    %v276 = vld [vmem:[#allocation10 + $0x30] sm:$0xff]
    %v277 = vld [vmem:[#allocation10 + $0x38] sm:$0xff]
    %v278 = vld [vmem:[#allocation10 + $0x40] sm:$0xff]
    %v279 = vld [vmem:[#allocation10 + $0x48] sm:$0xff]
    %v280 = vld [vmem:[#allocation10 + $0x50] sm:$0xff]
    %v281 = vld [vmem:[#allocation10 + $0x58] sm:$0xff]
    %v282 = vld [vmem:[#allocation10 + $0x60] sm:$0xff]
    %v283 = vld [vmem:[#allocation10 + $0x68] sm:$0xff]
    %v284 = vld [vmem:[#allocation10 + $0x70] sm:$0xff]
    %v285 = vld [vmem:[#allocation10 + $0x78] sm:$0xff]
    %v286 = vld [vmem:[%s8] sm:$0x1]
    %287 = vmatpush.xpose.msra.mxu0 %v285
    %288 = vmatpush.xpose.msra.mxu0 %v284
    %289 = vmatpush.xpose.msra.mxu0 %v283
    %290 = vmatpush.xpose.msra.mxu0 %v282
    %291 = vmatpush.xpose.msra.mxu0 %v281
    %292 = vmatpush.xpose.msra.mxu0 %v280
    %293 = vmatpush.xpose.msra.mxu0 %v279
    %294 = vmatpush.xpose.msra.mxu0 %v278
    %295 = vmatpush.xpose.msra.mxu0 %v277
    %296 = vmatpush.xpose.msra.mxu0 %v276
    %297 = vmatpush.xpose.msra.mxu0 %v275
    %298 = vmatpush.xpose.msra.mxu0 %v274
    %299 = vmatpush.xpose.msra.mxu0 %v273
    %300 = vmatpush.xpose.msra.mxu0 %v272
    %301 = vmatpush.xpose.msra.mxu0 %v271
    %302 = vmatpush.xpose.msra.mxu0 %v270
    %303 = vmatmul.f32.gmra.mxu0 %v269
    %v304 = vpop.f32.mrf.mxu0
    %v305 = vadd.f32 %v286, %v304
    %306 = vdwg.mxu0
    %v307 = vmax.f32 %v305, 0.0
    %v308 = vand.u32 2147483647, %v305
    %v309 = vsub.f32 0.0, %v308
    %v310 = vmul.f32 %v309, 1.442695
    %v311 = vpow.pop %v310
    %v312 = vadd.f32 %v311, 1.0
    %v313 = vlog2.pop %v312
    %v314 = vmul.f32 %v313, 0.6931472
    %v315 = vadd.f32 %v307, %v314
    %v316 = vld [vmem:[#allocation11] sm:$0xff]
    %v317 = vld [vmem:[#allocation11 + $0x8] sm:$0xff]
    %v318 = vld [vmem:[#allocation11 + $0x10] sm:$0xff]
    %v319 = vld [vmem:[#allocation11 + $0x18] sm:$0xff]
    %v320 = vld [vmem:[#allocation11 + $0x20] sm:$0xff]
    %v321 = vld [vmem:[#allocation11 + $0x28] sm:$0xff]
    %v322 = vld [vmem:[#allocation11 + $0x30] sm:$0xff]
    %v323 = vld [vmem:[#allocation11 + $0x38] sm:$0xff]
    %v324 = vld [vmem:[#allocation11 + $0x40] sm:$0xff]
    %v325 = vld [vmem:[#allocation11 + $0x48] sm:$0xff]
    %v326 = vld [vmem:[#allocation11 + $0x50] sm:$0xff]
    %v327 = vld [vmem:[#allocation11 + $0x58] sm:$0xff]
    %v328 = vld [vmem:[#allocation11 + $0x60] sm:$0xff]
    %v329 = vld [vmem:[#allocation11 + $0x68] sm:$0xff]
    %v330 = vld [vmem:[#allocation11 + $0x70] sm:$0xff]
    %v331 = vld [vmem:[#allocation11 + $0x78] sm:$0xff]
    %v332 = vld [vmem:[%s10] sm:$0x1]
    %333 = vmatpush.xpose.msra.mxu0 %v331
    %334 = vmatpush.xpose.msra.mxu0 %v330
    %335 = vmatpush.xpose.msra.mxu0 %v329
    %336 = vmatpush.xpose.msra.mxu0 %v328
    %337 = vmatpush.xpose.msra.mxu0 %v327
    %338 = vmatpush.xpose.msra.mxu0 %v326
    %339 = vmatpush.xpose.msra.mxu0 %v325
    %340 = vmatpush.xpose.msra.mxu0 %v324
    %341 = vmatpush.xpose.msra.mxu0 %v323
    %342 = vmatpush.xpose.msra.mxu0 %v322
    %343 = vmatpush.xpose.msra.mxu0 %v321
    %344 = vmatpush.xpose.msra.mxu0 %v320
    %345 = vmatpush.xpose.msra.mxu0 %v319
    %346 = vmatpush.xpose.msra.mxu0 %v318
    %347 = vmatpush.xpose.msra.mxu0 %v317
    %348 = vmatpush.xpose.msra.mxu0 %v316
    %349 = vmatmul.f32.gmra.mxu0 %v315
    %v350 = vpop.f32.mrf.mxu0
    %v351 = vadd.f32 %v332, %v350
    %352 = vdwg.mxu0
    %353 = vst [vmem:[#allocation13] sm:$0x1] %v351
    // Predicated region
    $region70: #{tpu_custom_call.1} parent=1 // pred_check
      _
    $region71: #{tpu_custom_call.1} parent=1 // pred_check_branch
      %355 = sbr.rel (0) target = $region73
    $region72: #{tpu_custom_call.1} parent=1 // pred_region
      %357 = vsyncadd [#allocation4], 0
      %s359 = sshll.u32 [#allocation13], 4
      %s360 = int_to_ptr.vmem [resolvable:$true] %s359
      %s361 = sshll.u32 %s11, 4
      %s362 = int_to_ptr.hbm [resolvable:$true] %s361
      %364 = dma.vmem_to_hbm [thread:$0]  %s360, 16, %s362, [#allocation4]
    $region73: #{tpu_custom_call.1} parent=1 // pred_fallthru
      _
    // Predicated region
    $region74: #{tpu_custom_call.1} parent=1 // pred_check
      _
    $region75: #{tpu_custom_call.1} parent=1 // pred_check_branch
      %366 = sbr.rel (0) target = $region77
    $region76: #{tpu_custom_call.1} parent=1 // pred_region
      %368 = dma.done [#allocation4], 16
    $region77: #{tpu_custom_call.1} parent=1 // pred_fallthru
      _
    %369 = vsyncpa [#allocation3], 1
    %370 = vsyncpa [#allocation6], 1
    %371 = vsyncpa [#allocation9], 1
    %372 = vsyncpa [#allocation12], 1
    %373 = vsyncpa [#allocation4], 1

</llo_original>
